<compile_context>
chip_gen: v6e
topology: v6e:2x2x1
jax: 0.10.0
libtpu: 0.0.40
codegen_flags: <defaults>
</compile_context>

<pallas_src>
import functools

import jax
import jax.numpy as jnp
import numpy as np
from jax.experimental import pallas as pl
from jax.experimental.pallas import tpu as pltpu


# -----------------------------------------------------------------------------
# pltpu.roll direction self-check (cached).  The conv needs shifted[i] = a[i+d];
# with jnp.roll semantics that is roll(a, -d).  Probe once so a different rotate
# convention cannot silently flip the 3x3 stencil.
# -----------------------------------------------------------------------------
_ROLL_SIGN = None


def _roll_sign():
    global _ROLL_SIGN
    if _ROLL_SIGN is None:
        def probe(x_ref, o_ref):
            o_ref[...] = pltpu.roll(x_ref[...], 17, axis=1)

        x = jnp.broadcast_to(jax.lax.iota(jnp.int32, 256), (8, 256))
        out = pl.pallas_call(
            probe,
            out_shape=jax.ShapeDtypeStruct((8, 256), jnp.int32),
            in_specs=[pl.BlockSpec(memory_space=pltpu.MemorySpace.VMEM)],
            out_specs=pl.BlockSpec(memory_space=pltpu.MemorySpace.VMEM),
        )(x)
        # jnp.roll convention: out[i] = in[i - shift]  ->  out[0, 17] == 0.
        _ROLL_SIGN = -1 if int(np.asarray(out)[0, 17]) == 0 else 1
    return _ROLL_SIGN


# -----------------------------------------------------------------------------
# Kernel: one image (C, S) per grid step.
# -----------------------------------------------------------------------------
def _residual_block_kernel(x_ref, p_ref, out_ref, *, C, H, W, roll_sign):
    """x_ref/out_ref: (C, S) f32 VMEM (S = H*W, lane-dense).

    p_ref: (2*(9*C*C + C),) f32 SMEM holding [w0 | b0 | w1 | b1] with weight
    flat index ((kh*3 + kw)*C + ci)*C + co  (HWIO order).
    """
    S = H * W
    n_w = 9 * C * C
    w0_off, b0_off = 0, n_w
    w1_off, b1_off = n_w + C, 2 * n_w + C

    x = x_ref[...]                                        # (C, S) f32

    # ---- boundary masks for the 8 off-centre taps (in-kernel, from iota) ----
    col = jax.lax.broadcasted_iota(jnp.int32, (1, S), 1)  # flat spatial index
    if W & (W - 1) == 0:                                  # W power of two
        wi = jnp.bitwise_and(col, W - 1)                  # column index
    else:
        wi = col - (col // W) * W
    row_ok = {-1: col >= W, 0: None, 1: col < (H - 1) * W}
    col_ok = {-1: wi >= 1, 0: None, 1: wi <= W - 2}
    masks = {}
    for dy in (-1, 0, 1):
        for dx in (-1, 0, 1):
            conds = [c for c in (row_ok[dy], col_ok[dx]) if c is not None]
            if not conds:
                continue                                  # centre tap: no mask
            m = conds[0] if len(conds) == 1 else jnp.logical_and(*conds)
            masks[(dy, dx)] = m.astype(jnp.float32)       # (1, S)

    # one-hot sublane columns used to scatter per-channel rows into (C, S)
    sub = jax.lax.broadcasted_iota(jnp.int32, (C, 1), 0)
    onehot = [(sub == co).astype(jnp.float32) for co in range(C)]

    def conv3x3_same(a_full, w_off, b_off):
        """SAME 3x3 conv of a_full (C, S); returns C rows of shape (1, S)."""
        acc = [None] * C
        for dy in (-1, 0, 1):
            for dx in (-1, 0, 1):
                d = dy * W + dx
                tap = a_full if d == 0 else pltpu.roll(
                    a_full, (roll_sign * d) % S, axis=1)   # XLU lane rotate
                if (dy, dx) in masks:
                    tap = tap * masks[(dy, dx)]            # zero-padding taps
                base_tap = ((dy + 1) * 3 + (dx + 1)) * C
                for ci in range(C):
                    src = tap[ci:ci + 1, :]                # (1, S) sublane slice
                    base = w_off + (base_tap + ci) * C
                    for co in range(C):
                        t = src * p_ref[base + co]         # SMEM scalar * vector
                        acc[co] = t if acc[co] is None else acc[co] + t
        return [acc[co] + p_ref[b_off + co] for co in range(C)]

    # relu -> conv0 -> relu -> conv1 -> + x
    h1 = conv3x3_same(jnp.maximum(x, 0.0), w0_off, b0_off)
    a1 = jnp.zeros_like(x)
    for co in range(C):
        a1 = a1 + onehot[co] * jnp.maximum(h1[co], 0.0)    # (C,1)*(1,S)
    h2 = conv3x3_same(a1, w1_off, b1_off)

    y = x                                                  # residual
    for co in range(C):
        y = y + onehot[co] * h2[co]
    out_ref[...] = y.astype(out_ref.dtype)


# -----------------------------------------------------------------------------
# Wrapper
# -----------------------------------------------------------------------------
def residual_block_forward(x_nchw, w0, b0, w1, b1):
    """x: (N, C, H, W); w0, w1: (3, 3, Cin, Cout) [HWIO]; b0, b1: (C,)."""
    n, c, h, w = x_nchw.shape
    s = h * w
    xf = x_nchw.astype(jnp.float32).reshape(n, c, s)       # free, no transpose
    params = jnp.concatenate([
        w0.astype(jnp.float32).reshape(-1),                # (kh, kw, ci, co)
        b0.astype(jnp.float32).reshape(-1),
        w1.astype(jnp.float32).reshape(-1),
        b1.astype(jnp.float32).reshape(-1),
    ])

    kernel = functools.partial(_residual_block_kernel, C=c, H=h, W=w,
                               roll_sign=_roll_sign())

    img_spec = pl.BlockSpec((None, c, s), lambda i: (i, 0, 0))       # VMEM
    smem_spec = pl.BlockSpec(memory_space=pltpu.MemorySpace.SMEM)    # params

    out = pl.pallas_call(
        kernel,
        out_shape=jax.ShapeDtypeStruct((n, c, s), jnp.float32),
        grid=(n,),
        in_specs=[img_spec, smem_spec],
        out_specs=img_spec,
        compiler_params=pltpu.CompilerParams(
            dimension_semantics=("parallel",)),
    )(xf, params)
    return out.reshape(n, c, h, w)


def residual_block_reference(x_nchw, w0, b0, w1, b1):
    """Pure-JAX reference with the exact PyTorch semantics (NCHW)."""
    dn = ('NCHW', 'HWIO', 'NCHW')
    h = jax.nn.relu(x_nchw)
    h = jax.lax.conv_general_dilated(h, w0, (1, 1), 'SAME', dimension_numbers=dn)
    h = h + b0.reshape(1, -1, 1, 1)
    h = jax.nn.relu(h)
    h = jax.lax.conv_general_dilated(h, w1, (1, 1), 'SAME', dimension_numbers=dn)
    h = h + b1.reshape(1, -1, 1, 1)
    return h + x_nchw


if __name__ == "__main__":
    key = jax.random.PRNGKey(0)
    n, c, hh, ww = 2, 4, 16, 16
    k_x, k_w0, k_b0, k_w1, k_b1 = jax.random.split(key, 5)

    x = jax.random.normal(k_x, (n, c, hh, ww), jnp.float32)
    bound = 1.0 / np.sqrt(c * 9)                 # PyTorch Conv2d default init scale
    w0 = jax.random.uniform(k_w0, (3, 3, c, c), jnp.float32, -bound, bound)
    b0 = jax.random.uniform(k_b0, (c,), jnp.float32, -bound, bound)
    w1 = jax.random.uniform(k_w1, (3, 3, c, c), jnp.float32, -bound, bound)
    b1 = jax.random.uniform(k_b1, (c,), jnp.float32, -bound, bound)

    out = residual_block_forward(x, w0, b0, w1, b1)
    out = jax.block_until_ready(out)

    ref = residual_block_reference(x, w0, b0, w1, b1)
    np.testing.assert_allclose(np.asarray(out), np.asarray(ref),
                               rtol=1e-4, atol=1e-4)
    print("KERNEL_OK")
</pallas_src>

<mosaic_0001>
module attributes {stable_mosaic.version = 11 : i64} {
  func.func @probe(%arg0: memref<8x256xi32, #tpu.memory_space<vmem>>, %arg1: memref<8x256xi32, #tpu.memory_space<vmem>>) attributes {dimension_semantics = [], scalar_prefetch = 0 : i64, scratch_operands = 0 : i64, tpu.core_type = #tpu.core_type<tc>} {
    %c0 = arith.constant 0 : index
    %c0_0 = arith.constant 0 : index
    %0 = vector.load %arg0[%c0, %c0_0] : memref<8x256xi32, #tpu.memory_space<vmem>>, vector<8x256xi32>
    %c17_i32 = arith.constant 17 : i32
    %1 = tpu.dynamic_rotate %0 by %c17_i32 dim 1 : vector<8x256xi32>, i32 -> vector<8x256xi32>
    %c0_1 = arith.constant 0 : index
    %c0_2 = arith.constant 0 : index
    %2 = vector.load %arg1[%c0_1, %c0_2] : memref<8x256xi32, #tpu.memory_space<vmem>>, vector<8x256xi32>
    tpu.vector_store %arg1[%c0_1, %c0_2], %1 {strides = array<i32>} : memref<8x256xi32, #tpu.memory_space<vmem>>, vector<8x256xi32>,
    return
  }
}

</mosaic_0001>

<llo_original>
// kernel: tpu_custom_call.1
$region0: #{tpu_custom_call.1}
  #allocation0 [shape = 'u32[]', space=smem, size = 0x4, offset = 0x4, fixed_abs, tag = 'smem constant byte address 0x4 - core index']
  #allocation1 [shape = 'u32[144,128]{1,0:T(1,128)}', space=vmem, size = 0x12000, scoped, tag = 'internal scratch']
  %s0 = inlined_call_operand.hbm [shape: s32[8,256], index: 0, kind: input, shape index: {}]
  %s1 = inlined_call_operand.hbm [shape: s32[8,256], index: 1, kind: output, shape index: {}]
  %s2 = sld [smem:[#allocation0]]
  $region18: #{tpu_custom_call.1} parent=0
    _
  %s4 = ssub.s32 1, %s2
  %s5 = scalar_select 0, %s4, %s2
  $region1: #{tpu_custom_call.1} parent=0
    #allocation2 [shape = 'u8[8192]{0}', space=vmem, size = 0x2000, scoped, tag = 'input window, operand 0, single buffered']
    #allocation3 [shape = 's32[1]{0}', space=sflag, size = 0x4, scoped, tag = 'scoped memory for tpu_custom_call.1']
    #allocation4 [shape = 's32[1]{0}', space=sflag, size = 0x4, scoped, tag = 'scoped memory for tpu_custom_call.1']
    #allocation5 [shape = 'u8[8192]{0}', space=vmem, size = 0x2000, scoped, tag = 'output window, operand 0, single buffered']
    %6 = vsyncpa [#allocation3], 0
    %7 = vsyncpa [#allocation4], 0
    // Predicated region
    $region2: #{tpu_custom_call.1} parent=1 // pred_check
      _
    $region3: #{tpu_custom_call.1} parent=1 // pred_check_branch
      %9 = sbr.rel (0) target = $region5
    $region4: #{tpu_custom_call.1} parent=1 // pred_region
      %s11 = ssub.s32 256, 256
      %12 = vsyncadd [#allocation3], %s11
      %s14 = sshll.u32 [#allocation2], 4
      %s15 = int_to_ptr.vmem [resolvable:$true] %s14
      %17 = dma.hbm_to_vmem [thread:$0]  %s0, 256, %s15, [#allocation3]
    $region5: #{tpu_custom_call.1} parent=1 // pred_fallthru
      _
    // Predicated region
    $region6: #{tpu_custom_call.1} parent=1 // pred_check
      _
    $region7: #{tpu_custom_call.1} parent=1 // pred_check_branch
      %19 = sbr.rel (0) target = $region9
    $region8: #{tpu_custom_call.1} parent=1 // pred_region
      %20 = dma.done [#allocation3], 256
    $region9: #{tpu_custom_call.1} parent=1 // pred_fallthru
      _
    %v21 = vld [vmem:[#allocation2] sm:$0xff]
    %v22 = vld [vmem:[#allocation2 + $0x8] sm:$0xff]
    %23 = vrot.lane.b32.xlu0 %v21, 17
    %v24 = vpop.permute.xlu0 %23
    %25 = vrot.lane.b32.xlu0 %v22, 17
    %v26 = vpop.permute.xlu0 %25
    %v27 = vlaneseq
    %v28 = vand.u32 %v27, 127
    %vm29 = vcmp.lt.s32.totalorder %v28, 17
    %v30 = vsel %vm29, %v24, %v26
    %v31 = vsel %vm29, %v26, %v24
    %32 = vst [vmem:[#allocation5] sm:$0xff] %v31
    %33 = vst [vmem:[#allocation5 + $0x8] sm:$0xff] %v30
    // Predicated region
    $region10: #{tpu_custom_call.1} parent=1 // pred_check
      _
    $region11: #{tpu_custom_call.1} parent=1 // pred_check_branch
      %35 = sbr.rel (0) target = $region13
    $region12: #{tpu_custom_call.1} parent=1 // pred_region
      %s37 = ssub.s32 256, 256
      %38 = vsyncadd [#allocation4], %s37
      %s40 = sshll.u32 [#allocation5], 4
      %s41 = int_to_ptr.vmem [resolvable:$true] %s40
      %43 = dma.vmem_to_hbm [thread:$0]  %s41, 256, %s1, [#allocation4]
    $region13: #{tpu_custom_call.1} parent=1 // pred_fallthru
      _
    // Predicated region
    $region14: #{tpu_custom_call.1} parent=1 // pred_check
      _
    $region15: #{tpu_custom_call.1} parent=1 // pred_check_branch
      %45 = sbr.rel (0) target = $region17
    $region16: #{tpu_custom_call.1} parent=1 // pred_region
      %46 = dma.done [#allocation4], 256
    $region17: #{tpu_custom_call.1} parent=1 // pred_fallthru
      _
    %47 = vsyncpa [#allocation3], 1
    %48 = vsyncpa [#allocation4], 1

</llo_original>
